<compile_context>
chip_gen: v7x
topology: tpu7x:2x2x1
jax: 0.10.0
libtpu: 0.0.40
codegen_flags: <defaults>
</compile_context>

<pallas_src>
import jax
import jax.numpy as jnp
from jax.experimental import pallas as pl
from jax.experimental.pallas import tpu as pltpu

BN_EPS = 1e-5
LEAKY_SLOPE = 0.01  # PyTorch nn.LeakyReLU() default negative_slope
LANE = 128
SUBLANE = 8


def decoder_kernel(x_ref, w1_ref, w2_ref, b2_ref, o_ref):
    # Linear 1 (no bias): bf16 operands, f32 accumulation on the MXU.
    h = jnp.dot(x_ref[...], w1_ref[...], preferred_element_type=jnp.float32)
    # LeakyReLU in f32 on the VPU.
    h = jnp.where(h >= 0, h, LEAKY_SLOPE * h)
    # Linear 2 with BatchNorm pre-folded into (w2, b2); cast activations to bf16
    # only for the MXU operands, add the f32 bias to the f32 accumulator.
    out = jnp.dot(h.astype(w2_ref.dtype), w2_ref[...],
                  preferred_element_type=jnp.float32) + b2_ref[...]
    o_ref[...] = out.astype(o_ref.dtype)


def prepare_decoder_params(params, lane=LANE):
    """Fold inference-mode BN into Linear2, pad to lane-dense width, cast to bf16."""
    w1, gamma, beta, mean, var, w2, b2 = params
    # BN(h) = scale*h + shift  with  scale = gamma/sqrt(var+eps), shift = beta - mean*scale
    scale = gamma * jax.lax.rsqrt(var + BN_EPS)          # (1, H)
    shift = beta - mean * scale                           # (1, H)
    # (scale*h + shift) @ w2 + b2 == h @ (scale^T * w2) + (shift @ w2 + b2)   (exact)
    w2f = scale.reshape(-1, 1) * w2                       # (H, F)
    b2f = shift @ w2 + b2                                 # (1, F)
    # Lane-dense output: pad F up to a multiple of 128 (zero columns).
    nfeat = w2.shape[1]
    f_pad = -nfeat % lane
    if f_pad:
        w2f = jnp.pad(w2f, ((0, 0), (0, f_pad)))
        b2f = jnp.pad(b2f, ((0, 0), (0, f_pad)))
    # bf16 MXU operands; bias stays f32.
    return (w1.astype(jnp.bfloat16),
            w2f.astype(jnp.bfloat16),
            b2f.astype(jnp.float32),
            nfeat)


def decoder_forward(x, prepared, *, block_b=256):
    w1, w2f, b2f, nfeat = prepared
    B, z_dim = x.shape
    H = w1.shape[1]
    FP = w2f.shape[1]

    # Row tile over the batch: weights stay resident (constant index_map).
    b_aligned = -(-B // SUBLANE) * SUBLANE
    tb = min(block_b, b_aligned)
    b_pad = -B % tb
    x_p = jnp.pad(x, ((0, b_pad), (0, 0))) if b_pad else x
    x_p = x_p.astype(jnp.bfloat16)
    grid = ((B + b_pad) // tb,)

    out = pl.pallas_call(
        decoder_kernel,
        out_shape=jax.ShapeDtypeStruct((B + b_pad, FP), jnp.float32),
        grid=grid,
        in_specs=[
            pl.BlockSpec((tb, z_dim), lambda i: (i, 0)),   # x rows, tiled
            pl.BlockSpec((z_dim, H), lambda i: (0, 0)),    # w1, resident
            pl.BlockSpec((H, FP), lambda i: (0, 0)),       # folded w2, resident
            pl.BlockSpec((1, FP), lambda i: (0, 0)),       # folded b2, resident
        ],
        out_specs=pl.BlockSpec((tb, FP), lambda i: (i, 0)),
        compiler_params=pltpu.CompilerParams(
            dimension_semantics=("parallel",)),
    )(x_p, w1, w2f, b2f)

    return out[:B, :nfeat]


def make_params(key, z_dim, hidden, nfeat):
    ks = jax.random.split(key, 6)
    # Linear1: PyTorch stores (hidden, z_dim); we keep the transpose (z_dim, hidden).
    w1 = jax.random.normal(ks[0], (z_dim, hidden), jnp.float32) * 0.1
    # BatchNorm1d(hidden) params / running stats (deterministic, non-trivial).
    gamma = 1.0 + 0.05 * jax.random.normal(ks[1], (1, hidden), jnp.float32)
    beta = 0.05 * jax.random.normal(ks[2], (1, hidden), jnp.float32)
    mean = 0.1 * jax.random.normal(ks[3], (1, hidden), jnp.float32)
    var = jnp.abs(1.0 + 0.1 * jax.random.normal(ks[4], (1, hidden), jnp.float32))
    # Linear2: transpose of PyTorch's (nfeat, hidden) -> (hidden, nfeat), plus bias.
    w2 = jax.random.normal(ks[5], (hidden, nfeat), jnp.float32) * 0.1
    b2 = 0.01 * jnp.arange(nfeat, dtype=jnp.float32).reshape(1, nfeat)
    return (w1, gamma, beta, mean, var, w2, b2)


def decoder_reference(x, params):
    # Exact f32 reference of the PyTorch forward (inference-mode BN).
    w1, gamma, beta, mean, var, w2, b2 = params
    h = x @ w1
    h = jnp.where(h >= 0, h, LEAKY_SLOPE * h)
    h = (h - mean) * jax.lax.rsqrt(var + BN_EPS) * gamma + beta
    return h @ w2 + b2


if __name__ == "__main__":
    # Small Decoder config: z_dim=16, hidden_rna=24, hidden_pro=8 -> hidden=32,
    # nfeatures_rna=48, nfeatures_pro=16 -> output features=64, batch=8.
    nfeatures_rna, nfeatures_pro = 48, 16
    hidden_rna, hidden_pro = 24, 8
    z_dim = 16
    batch = 8

    hidden = hidden_rna + hidden_pro
    nfeat = nfeatures_rna + nfeatures_pro

    key = jax.random.PRNGKey(0)
    kx, kp = jax.random.split(key)
    x = jax.random.normal(kx, (batch, z_dim), jnp.float32)
    params = make_params(kp, z_dim, hidden, nfeat)
    prepared = prepare_decoder_params(params)

    out = decoder_forward(x, prepared)
    out = jax.block_until_ready(out)

    ref = decoder_reference(x, params)
    assert out.shape == (batch, nfeat)
    # bf16 MXU operands -> compare against the exact f32 reference with bf16-scale tolerance.
    assert jnp.allclose(out, ref, atol=5e-2, rtol=5e-2), float(jnp.max(jnp.abs(out - ref)))

    print("KERNEL_OK")
</pallas_src>

<mosaic_0001>
module attributes {stable_mosaic.version = 11 : i64} {
  func.func @decoder_kernel(%arg0: i32, %arg1: memref<8x16xbf16, #tpu.memory_space<vmem>>, %arg2: memref<16x32xbf16, #tpu.memory_space<vmem>>, %arg3: memref<32x128xbf16, #tpu.memory_space<vmem>>, %arg4: memref<1x128xf32, #tpu.memory_space<vmem>>, %arg5: memref<8x128xf32, #tpu.memory_space<vmem>>) attributes {dimension_semantics = [#tpu.dimension_semantics<parallel>], iteration_bounds = array<i64: 1>, scalar_prefetch = 0 : i64, scratch_operands = 0 : i64, tpu.core_type = #tpu.core_type<tc>, window_params = [{transform_indices = @transform_0, window_bounds = array<i64: 8, 16>}, {pipeline_mode = #tpu.pipeline_mode<synchronous>, transform_indices = @transform_1, window_bounds = array<i64: 16, 32>}, {pipeline_mode = #tpu.pipeline_mode<synchronous>, transform_indices = @transform_2, window_bounds = array<i64: 32, 128>}, {pipeline_mode = #tpu.pipeline_mode<synchronous>, transform_indices = @transform_3, window_bounds = array<i64: 1, 128>}, {transform_indices = @transform_4, window_bounds = array<i64: 8, 128>}]} {
    %c0 = arith.constant 0 : index
    %c0_0 = arith.constant 0 : index
    %0 = vector.load %arg1[%c0, %c0_0] : memref<8x16xbf16, #tpu.memory_space<vmem>>, vector<8x16xbf16>
    %c0_1 = arith.constant 0 : index
    %c0_2 = arith.constant 0 : index
    %1 = vector.load %arg2[%c0_1, %c0_2] : memref<16x32xbf16, #tpu.memory_space<vmem>>, vector<16x32xbf16>
    %cst = arith.constant dense<0.000000e+00> : vector<8x32xf32>
    %2 = tpu.matmul %0, %1, %cst {dimension_numbers = #tpu.dot_dimension_numbers<[1], [0], [0], [1], [0, 0, 1, 1], [], []>} : vector<8x16xbf16>, vector<16x32xbf16>, vector<8x32xf32> -> vector<8x32xf32>
    %cst_3 = arith.constant 0.000000e+00 : f32
    %3 = vector.broadcast %cst_3 : f32 to vector<8x32xf32>
    %4 = arith.cmpf oge, %2, %3 : vector<8x32xf32>
    %cst_4 = arith.constant 0.00999999977 : f32
    %5 = vector.broadcast %cst_4 : f32 to vector<8x32xf32>
    %6 = arith.mulf %5, %2 : vector<8x32xf32>
    %7 = arith.select %4, %2, %6 : vector<8x32xi1>, vector<8x32xf32>
    %8 = arith.truncf %7 : vector<8x32xf32> to vector<8x32xbf16>
    %c0_5 = arith.constant 0 : index
    %c0_6 = arith.constant 0 : index
    %9 = vector.load %arg3[%c0_5, %c0_6] : memref<32x128xbf16, #tpu.memory_space<vmem>>, vector<32x128xbf16>
    %cst_7 = arith.constant dense<0.000000e+00> : vector<8x128xf32>
    %10 = tpu.matmul %8, %9, %cst_7 {dimension_numbers = #tpu.dot_dimension_numbers<[1], [0], [0], [1], [0, 0, 1, 1], [], []>} : vector<8x32xbf16>, vector<32x128xbf16>, vector<8x128xf32> -> vector<8x128xf32>
    %c0_8 = arith.constant 0 : index
    %c0_9 = arith.constant 0 : index
    %11 = vector.load %arg4[%c0_8, %c0_9] : memref<1x128xf32, #tpu.memory_space<vmem>>, vector<1x128xf32>
    %12 = vector.broadcast %11 : vector<1x128xf32> to vector<8x128xf32>
    %13 = arith.addf %10, %12 : vector<8x128xf32>
    %c0_10 = arith.constant 0 : index
    %c0_11 = arith.constant 0 : index
    %14 = vector.load %arg5[%c0_10, %c0_11] : memref<8x128xf32, #tpu.memory_space<vmem>>, vector<8x128xf32>
    tpu.vector_store %arg5[%c0_10, %c0_11], %13 {strides = array<i32>} : memref<8x128xf32, #tpu.memory_space<vmem>>, vector<8x128xf32>,
    return
  }
  func.func @transform_0(%arg0: i32) -> (i32, i32) {
    %c0_i32 = arith.constant 0 : i32
    %c0_i32_0 = arith.constant 0 : i32
    return %arg0, %c0_i32 : i32, i32
  }
  func.func @transform_1(%arg0: i32) -> (i32, i32) {
    %c0_i32 = arith.constant 0 : i32
    %c0_i32_0 = arith.constant 0 : i32
    %c0_i32_1 = arith.constant 0 : i32
    return %c0_i32, %c0_i32_0 : i32, i32
  }
  func.func @transform_2(%arg0: i32) -> (i32, i32) {
    %c0_i32 = arith.constant 0 : i32
    %c0_i32_0 = arith.constant 0 : i32
    %c0_i32_1 = arith.constant 0 : i32
    return %c0_i32, %c0_i32_0 : i32, i32
  }
  func.func @transform_3(%arg0: i32) -> (i32, i32) {
    %c0_i32 = arith.constant 0 : i32
    %c0_i32_0 = arith.constant 0 : i32
    %c0_i32_1 = arith.constant 0 : i32
    return %c0_i32, %c0_i32_0 : i32, i32
  }
  func.func @transform_4(%arg0: i32) -> (i32, i32) {
    %c0_i32 = arith.constant 0 : i32
    %c0_i32_0 = arith.constant 0 : i32
    return %arg0, %c0_i32 : i32, i32
  }
}

</mosaic_0001>

<llo_original>
// kernel: tpu_custom_call.1
$region0: #{tpu_custom_call.1}
  #allocation0 [shape = 'u32[]', space=smem, size = 0x4, offset = 0x4, fixed_abs, tag = 'smem constant byte address 0x4 - core index']
  #allocation1 [shape = 'u32[144,128]{1,0:T(1,128)}', space=vmem, size = 0x12000, scoped, tag = 'internal scratch']
  %s0 = inlined_call_operand.hbm [shape: bf16[8,16], index: 0, kind: input, shape index: {}]
  %s1 = inlined_call_operand.hbm [shape: bf16[16,32], index: 1, kind: input, shape index: {}]
  %s2 = inlined_call_operand.hbm [shape: bf16[32,128], index: 2, kind: input, shape index: {}]
  %s3 = inlined_call_operand.vmem [shape: f32[1,128], index: 3, kind: input, shape index: {}]
  %s4 = inlined_call_operand.hbm [shape: f32[8,128], index: 4, kind: output, shape index: {}]
  %s5 = sld [smem:[#allocation0]]
  $region38: #{tpu_custom_call.1} parent=0
    _
  %s7 = ssub.s32 1, %s5
  %s8 = scalar_select 0, %s7, %s5
  $region1: #{tpu_custom_call.1} parent=0
    #allocation2 [shape = 'u8[2048]{0}', space=vmem, size = 0x800, scoped, tag = 'input window, operand 0, single buffered']
    #allocation3 [shape = 's32[1]{0}', space=sflag, size = 0x4, scoped, tag = 'scoped memory for tpu_custom_call.1']
    #allocation4 [shape = 's32[1]{0}', space=sflag, size = 0x4, scoped, tag = 'scoped memory for tpu_custom_call.1']
    #allocation5 [shape = 'u8[4096]{0}', space=vmem, size = 0x1000, scoped, tag = 'input window, operand 1, single buffered']
    #allocation6 [shape = 's32[1]{0}', space=sflag, size = 0x4, scoped, tag = 'scoped memory for tpu_custom_call.1']
    #allocation7 [shape = 'u8[8192]{0}', space=vmem, size = 0x2000, scoped, tag = 'input window, operand 2, single buffered']
    #allocation8 [shape = 'u8[4096]{0}', space=vmem, size = 0x1000, scoped, tag = 'output window, operand 0, single buffered']
    %9 = vsyncpa [#allocation3], 0
    %10 = vsyncpa [#allocation6], 0
    %11 = vsyncpa [#allocation4], 0
    // Predicated region
    $region2: #{tpu_custom_call.1} parent=1 // pred_check
      _
    $region3: #{tpu_custom_call.1} parent=1 // pred_check_branch
      %13 = sbr.rel (0) target = $region5
    $region4: #{tpu_custom_call.1} parent=1 // pred_region
      %s15 = ssub.s32 64, 64
      %16 = vsyncadd [#allocation3], %s15
      %s18 = sshll.u32 [#allocation2], 4
      %s19 = int_to_ptr.vmem [resolvable:$true] %s18
      %21 = dma.hbm_to_vmem [thread:$0]  %s0, 64, %s19, [#allocation3]
    $region5: #{tpu_custom_call.1} parent=1 // pred_fallthru
      _
    // Predicated region
    $region6: #{tpu_custom_call.1} parent=1 // pred_check
      _
    $region7: #{tpu_custom_call.1} parent=1 // pred_check_branch
      %23 = sbr.rel (0) target = $region9
    $region8: #{tpu_custom_call.1} parent=1 // pred_region
      %s25 = ssub.s32 128, 128
      %26 = vsyncadd [#allocation6], %s25
      %s27 = sshll.u32 [#allocation5], 4
      %s28 = int_to_ptr.vmem [resolvable:$true] %s27
      %33 = dma.hbm_to_vmem [thread:$0]  %s1, 128, %s28, [#allocation6], 64, 64, 4
    $region9: #{tpu_custom_call.1} parent=1 // pred_fallthru
      _
    // Predicated region
    $region10: #{tpu_custom_call.1} parent=1 // pred_check
      _
    $region11: #{tpu_custom_call.1} parent=1 // pred_check_branch
      %35 = sbr.rel (0) target = $region13
    $region12: #{tpu_custom_call.1} parent=1 // pred_region
      %s37 = ssub.s32 256, 256
      %38 = vsyncadd [#allocation6], %s37
      %s39 = sshll.u32 [#allocation7], 4
      %s40 = int_to_ptr.vmem [resolvable:$true] %s39
      %45 = dma.hbm_to_vmem [thread:$0]  %s2, 256, %s40, [#allocation6], 64, 64, 4
    $region13: #{tpu_custom_call.1} parent=1 // pred_fallthru
      _
    // Predicated region
    $region14: #{tpu_custom_call.1} parent=1 // pred_check
      _
    $region15: #{tpu_custom_call.1} parent=1 // pred_check_branch
      %47 = sbr.rel (0) target = $region17
    $region16: #{tpu_custom_call.1} parent=1 // pred_region
      _
    $region17: #{tpu_custom_call.1} parent=1 // pred_fallthru
      _
    // Predicated region
    $region18: #{tpu_custom_call.1} parent=1 // pred_check
      _
    $region19: #{tpu_custom_call.1} parent=1 // pred_check_branch
      %49 = sbr.rel (0) target = $region21
    $region20: #{tpu_custom_call.1} parent=1 // pred_region
      %50 = dma.done [#allocation3], 64
    $region21: #{tpu_custom_call.1} parent=1 // pred_fallthru
      _
    // Predicated region
    $region22: #{tpu_custom_call.1} parent=1 // pred_check
      _
    $region23: #{tpu_custom_call.1} parent=1 // pred_check_branch
      %52 = sbr.rel (0) target = $region25
    $region24: #{tpu_custom_call.1} parent=1 // pred_region
      %53 = dma.done [#allocation6], 128
    $region25: #{tpu_custom_call.1} parent=1 // pred_fallthru
      _
    // Predicated region
    $region26: #{tpu_custom_call.1} parent=1 // pred_check
      _
    $region27: #{tpu_custom_call.1} parent=1 // pred_check_branch
      %55 = sbr.rel (0) target = $region29
    $region28: #{tpu_custom_call.1} parent=1 // pred_region
      %56 = dma.done [#allocation6], 256
    $region29: #{tpu_custom_call.1} parent=1 // pred_fallthru
      _
    %v58 = vld [vmem:[#allocation2] sm:$0xf]
    %v59 = vld [vmem:[#allocation5] sm:$0xf]
    %v60 = vld [vmem:[#allocation5 + $0x4] sm:$0xf]
    %v63 = vunpack.c.l.b16 %v59
    %v64 = vunpack.c.l.b16 %v60
    %v65 = vpack.c.b16 %v64, %v63
    %vm67 = vcmask 130048
    %v69 = vsel %vm67, %v58, 0
    %71 = vmatprep.subr.bf16.mxu0 0
    %72 = vmatpush1.bf16.msra.mxu0 %v65
    %73 = vmatprep.subr.bf16.mxu0 0
    %74 = vmatpush1.bf16.msra.mxu0 0
    %75 = vmatprep.subr.bf16.mxu0 0
    %76 = vmatpush1.bf16.msra.mxu0 0
    %77 = vmatprep.subr.bf16.mxu0 0
    %78 = vmatpush1.bf16.msra.mxu0 0
    %79 = vmatprep.subr.bf16.mxu0 0
    %80 = vmatpush1.bf16.msra.mxu0 0
    %81 = vmatprep.subr.bf16.mxu0 0
    %82 = vmatpush1.bf16.msra.mxu0 0
    %83 = vmatprep.subr.bf16.mxu0 0
    %84 = vmatpush1.bf16.msra.mxu0 0
    %85 = vmatprep.subr.bf16.mxu0 0
    %86 = vmatpush1.bf16.msra.mxu0 0
    %87 = vmatprep.subr.bf16.mxu0 0
    %88 = vmatpush1.bf16.msra.mxu0 0
    %89 = vmatprep.subr.bf16.mxu0 0
    %90 = vmatpush1.bf16.msra.mxu0 0
    %91 = vmatprep.subr.bf16.mxu0 0
    %92 = vmatpush1.bf16.msra.mxu0 0
    %93 = vmatprep.subr.bf16.mxu0 0
    %94 = vmatpush1.bf16.msra.mxu0 0
    %95 = vmatprep.subr.bf16.mxu0 0
    %96 = vmatpush1.bf16.msra.mxu0 0
    %97 = vmatprep.subr.bf16.mxu0 0
    %98 = vmatpush1.bf16.msra.mxu0 0
    %99 = vmatprep.subr.bf16.mxu0 0
    %100 = vmatpush1.bf16.msra.mxu0 0
    %101 = vmatprep.subr.bf16.mxu0 0
    %102 = vmatpush1.bf16.msra.mxu0 0
    %103 = vmatprep.mubr.bf16.mxu0 0
    %104 = vmatmul.mubr.bf16.gmra.mrb[0].mxu0 %v69
    %v105 = vpop.f32.mrb[0].mxu0
    %v106 = vadd.f32 0.0, %v105
    %v107 = vpop.f32.mrb[0].mxu0
    %v108 = vpop.f32.mrb[0].mxu0
    %v109 = vpop.f32.mrb[0].mxu0
    %110 = vdwg.mxu0
    %vm111 = vcmp.ge.f32.partialorder %v106, 0.0
    %v112 = vmul.f32 %v106, 0.01
    %v113 = vsel %vm111, %v106, %v112
    %v114 = vpack.c.bf16 %v113, %v113
    %v115 = vld [vmem:[#allocation7] sm:$0xf]
    %v116 = vld [vmem:[#allocation7 + $0x4] sm:$0xf]
    %v117 = vld [vmem:[#allocation7 + $0x8] sm:$0xf]
    %v118 = vld [vmem:[#allocation7 + $0xc] sm:$0xf]
    %v119 = vld [vmem:[%s3] sm:$0x1]
    %v121 = vlaneseq
    %v122 = vshrl.u32 %v121, 7
    %v123 = vsub.s32 0, %v122
    %v124 = vrot.slane %v119, %v123
    %v130 = vunpack.c.l.b16 %v115
    %v131 = vunpack.c.l.b16 %v116
    %v132 = vunpack.c.l.b16 %v117
    %v133 = vunpack.c.l.b16 %v118
    %v134 = vpack.c.b16 %v131, %v130
    %v135 = vpack.c.b16 %v133, %v132
    %vm138 = vcmask 261120
    %v140 = vsel %vm138, %v114, 0
    %142 = vmatprep.subr.bf16.mxu0 0
    %143 = vmatpush1.bf16.msra.mxu0 %v134
    %144 = vmatprep.subr.bf16.mxu0 0
    %145 = vmatpush1.bf16.msra.mxu0 %v135
    %146 = vmatprep.subr.bf16.mxu0 0
    %147 = vmatpush1.bf16.msra.mxu0 0
    %148 = vmatprep.subr.bf16.mxu0 0
    %149 = vmatpush1.bf16.msra.mxu0 0
    %150 = vmatprep.subr.bf16.mxu0 0
    %151 = vmatpush1.bf16.msra.mxu0 0
    %152 = vmatprep.subr.bf16.mxu0 0
    %153 = vmatpush1.bf16.msra.mxu0 0
    %154 = vmatprep.subr.bf16.mxu0 0
    %155 = vmatpush1.bf16.msra.mxu0 0
    %156 = vmatprep.subr.bf16.mxu0 0
    %157 = vmatpush1.bf16.msra.mxu0 0
    %158 = vmatprep.subr.bf16.mxu0 0
    %159 = vmatpush1.bf16.msra.mxu0 0
    %160 = vmatprep.subr.bf16.mxu0 0
    %161 = vmatpush1.bf16.msra.mxu0 0
    %162 = vmatprep.subr.bf16.mxu0 0
    %163 = vmatpush1.bf16.msra.mxu0 0
    %164 = vmatprep.subr.bf16.mxu0 0
    %165 = vmatpush1.bf16.msra.mxu0 0
    %166 = vmatprep.subr.bf16.mxu0 0
    %167 = vmatpush1.bf16.msra.mxu0 0
    %168 = vmatprep.subr.bf16.mxu0 0
    %169 = vmatpush1.bf16.msra.mxu0 0
    %170 = vmatprep.subr.bf16.mxu0 0
    %171 = vmatpush1.bf16.msra.mxu0 0
    %172 = vmatprep.subr.bf16.mxu0 0
    %173 = vmatpush1.bf16.msra.mxu0 0
    %174 = vmatprep.mubr.bf16.mxu0 0
    %175 = vmatmul.mubr.bf16.gmra.mrb[0].mxu0 %v140
    %v176 = vpop.f32.mrb[0].mxu0
    %v177 = vadd.f32 %v124, %v176
    %v178 = vpop.f32.mrb[0].mxu0
    %v179 = vpop.f32.mrb[0].mxu0
    %v180 = vpop.f32.mrb[0].mxu0
    %181 = vdwg.mxu0
    %182 = vst [vmem:[#allocation8] sm:$0xff] %v177
    // Predicated region
    $region30: #{tpu_custom_call.1} parent=1 // pred_check
      _
    $region31: #{tpu_custom_call.1} parent=1 // pred_check_branch
      %184 = sbr.rel (0) target = $region33
    $region32: #{tpu_custom_call.1} parent=1 // pred_region
      %s186 = ssub.s32 128, 128
      %187 = vsyncadd [#allocation4], %s186
      %s189 = sshll.u32 [#allocation8], 4
      %s190 = int_to_ptr.vmem [resolvable:$true] %s189
      %192 = dma.vmem_to_hbm [thread:$0]  %s190, 128, %s4, [#allocation4]
    $region33: #{tpu_custom_call.1} parent=1 // pred_fallthru
      _
    // Predicated region
    $region34: #{tpu_custom_call.1} parent=1 // pred_check
      _
    $region35: #{tpu_custom_call.1} parent=1 // pred_check_branch
      %194 = sbr.rel (0) target = $region37
    $region36: #{tpu_custom_call.1} parent=1 // pred_region
      %195 = dma.done [#allocation4], 128
    $region37: #{tpu_custom_call.1} parent=1 // pred_fallthru
      _
    %196 = vsyncpa [#allocation3], 1
    %197 = vsyncpa [#allocation6], 1
    %198 = vsyncpa [#allocation4], 1

</llo_original>
